<compile_context>
chip_gen: v7x
topology: tpu7x:2x2x1
jax: 0.10.0
libtpu: 0.0.40
codegen_flags: <defaults>
</compile_context>

<pallas_src>
import functools

import jax
import jax.numpy as jnp
from jax.experimental import pallas as pl
from jax.experimental.pallas import tpu as pltpu


def layernorm_kernel(x_ref, g_ref, b_ref, o_ref, *, eps):
    # x_ref: (TR, D) tile of rows; g_ref/b_ref: (1, D) broadcast params.
    x = x_ref[...].astype(jnp.float32)
    mean = jnp.mean(x, axis=-1, keepdims=True)
    centered = x - mean
    # Two-pass (centered) variance matches torch.var(unbiased=False) and is
    # numerically safer than E[x^2] - mean^2 for low-precision inputs.
    var = jnp.mean(centered * centered, axis=-1, keepdims=True)
    inv = jax.lax.rsqrt(var + eps)  # EUP slot -> effectively free vs the VPU work
    g = g_ref[...].astype(jnp.float32)
    b = b_ref[...].astype(jnp.float32)
    o_ref[...] = ((centered * inv) * g + b).astype(o_ref.dtype)


def _pick_tile_rows(rows, dim, dtype, requested=1024, vmem_block_budget=12 << 20):
    """Pick a row tile: large (roofline-friendly), sublane-aligned, VMEM-safe.

    Working set per grid step ~= 2 double-buffered input tiles + 2 double-
    buffered output tiles, bounded above by f32: 4 * tile_rows * dim * 4 bytes.
    Capping at ~12 MiB keeps us inside the default scoped VMEM on v5e (16 MiB)
    and well inside v6e/v7x limits (we also raise vmem_limit_bytes below).
    """
    itemsize = jnp.dtype(dtype).itemsize
    sublane = max(8, 32 // itemsize)  # f32 -> 8, bf16 -> 16 (full-vreg sublanes)
    max_by_vmem = max(sublane, vmem_block_budget // (4 * dim * 4))
    tr = min(int(requested), int(max_by_vmem))
    tr = max(sublane, (tr // sublane) * sublane)
    if tr >= rows:
        # A single block spanning the full (possibly ragged) row dim is legal.
        return rows
    return tr


def layer_norm(x, gamma, beta, *, eps=1e-5, tile_rows=None):
    orig_shape = x.shape
    dim = orig_shape[-1]
    rows = 1
    for s in orig_shape[:-1]:
        rows *= s
    x2 = x.reshape(rows, dim)
    g2 = gamma.reshape(1, dim)
    b2 = beta.reshape(1, dim)

    tr = _pick_tile_rows(rows, dim, x.dtype, requested=tile_rows or 1024)
    grid = (pl.cdiv(rows, tr),)  # ragged tail handled by padded/masked last block

    itemsize = jnp.dtype(x.dtype).itemsize
    cost = pl.CostEstimate(
        flops=8 * rows * dim,
        transcendentals=rows,
        bytes_accessed=2 * rows * dim * itemsize + 2 * dim * 4,
    )

    out = pl.pallas_call(
        functools.partial(layernorm_kernel, eps=eps),
        out_shape=jax.ShapeDtypeStruct((rows, dim), x.dtype),
        grid_spec=pltpu.PrefetchScalarGridSpec(
            num_scalar_prefetch=0,
            grid=grid,
            in_specs=[
                pl.BlockSpec((tr, dim), lambda i: (i, 0)),
                pl.BlockSpec((1, dim), lambda i: (0, 0)),
                pl.BlockSpec((1, dim), lambda i: (0, 0)),
            ],
            out_specs=pl.BlockSpec((tr, dim), lambda i: (i, 0)),
        ),
        compiler_params=pltpu.CompilerParams(
            # Single independent row-tile axis: "parallel" lets v7x shard grid
            # steps across its two TensorCores; harmless on v5e/v6e.
            dimension_semantics=("parallel",),
            # Headroom for the ~12 MiB double-buffered working set; safe on
            # v5e/v6e (128 MiB physical) and v7x (64 MiB physical).
            vmem_limit_bytes=32 * 1024 * 1024,
        ),
        cost_estimate=cost,
    )(x2, g2, b2)
    return out.reshape(orig_shape)


def _reference(x, gamma, beta, eps):
    mean = jnp.mean(x, axis=-1, keepdims=True)
    var = jnp.mean((x - mean) ** 2, axis=-1, keepdims=True)
    return (x - mean) / jnp.sqrt(var + eps) * gamma + beta


if __name__ == "__main__":
    dim = 768  # matches nn.Parameter(torch.ones(768)) in the module
    key = jax.random.PRNGKey(0)

    # Small shape consistent with the module's (B, C, H, dim) usage: 64 rows.
    x = jax.random.normal(key, (2, 4, 8, dim), dtype=jnp.float32)
    gamma = jnp.ones((dim,), dtype=jnp.float32)   # self.gemma
    beta = jnp.zeros((dim,), dtype=jnp.float32)   # self.beta

    out = jax.block_until_ready(layer_norm(x, gamma, beta, eps=1e-5))
    ref = _reference(x, gamma, beta, 1e-5)
    assert jnp.allclose(out, ref, atol=1e-5, rtol=1e-5), "mismatch vs reference (main)"

    # Ragged-tail check: 40 rows with an explicit 16-row tile -> grid of 3 with
    # a partial (masked) last block, validating the cdiv path.
    x_r = jax.random.normal(jax.random.PRNGKey(1), (1, 5, 8, dim), dtype=jnp.float32)
    out_r = jax.block_until_ready(layer_norm(x_r, gamma, beta, eps=1e-5, tile_rows=16))
    ref_r = _reference(x_r, gamma, beta, 1e-5)
    assert jnp.allclose(out_r, ref_r, atol=1e-5, rtol=1e-5), "mismatch vs reference (ragged)"

    print("KERNEL_OK")
</pallas_src>

<mosaic_0001>
module attributes {stable_mosaic.version = 11 : i64} {
  func.func @layernorm_kernel(%arg0: i32, %arg1: memref<64x768xf32, #tpu.memory_space<vmem>>, %arg2: memref<1x768xf32, #tpu.memory_space<vmem>>, %arg3: memref<1x768xf32, #tpu.memory_space<vmem>>, %arg4: memref<64x768xf32, #tpu.memory_space<vmem>>) attributes {dimension_semantics = [#tpu.dimension_semantics<parallel>], iteration_bounds = array<i64: 1>, scalar_prefetch = 0 : i64, scratch_operands = 0 : i64, tpu.core_type = #tpu.core_type<tc>, window_params = [{transform_indices = @transform_0, window_bounds = array<i64: 64, 768>}, {pipeline_mode = #tpu.pipeline_mode<synchronous>, transform_indices = @transform_1, window_bounds = array<i64: 1, 768>}, {pipeline_mode = #tpu.pipeline_mode<synchronous>, transform_indices = @transform_2, window_bounds = array<i64: 1, 768>}, {transform_indices = @transform_3, window_bounds = array<i64: 64, 768>}]} {
    %c0 = arith.constant 0 : index
    %c0_0 = arith.constant 0 : index
    %0 = vector.load %arg1[%c0, %c0_0] : memref<64x768xf32, #tpu.memory_space<vmem>>, vector<64x768xf32>
    %cst = arith.constant dense<0.000000e+00> : vector<64xf32>
    %1 = vector.multi_reduction <add>, %0, %cst [1] : vector<64x768xf32> to vector<64xf32>
    %2 = vector.shape_cast %1 : vector<64xf32> to vector<64x1xf32>
    %cst_1 = arith.constant 7.680000e+02 : f32
    %3 = vector.broadcast %cst_1 : f32 to vector<64x1xf32>
    %4 = arith.divf %2, %3 : vector<64x1xf32>
    %5 = vector.broadcast %4 : vector<64x1xf32> to vector<64x768xf32>
    %6 = arith.subf %0, %5 : vector<64x768xf32>
    %7 = arith.mulf %6, %6 : vector<64x768xf32>
    %cst_2 = arith.constant dense<0.000000e+00> : vector<64xf32>
    %8 = vector.multi_reduction <add>, %7, %cst_2 [1] : vector<64x768xf32> to vector<64xf32>
    %9 = vector.shape_cast %8 : vector<64xf32> to vector<64x1xf32>
    %cst_3 = arith.constant 7.680000e+02 : f32
    %10 = vector.broadcast %cst_3 : f32 to vector<64x1xf32>
    %11 = arith.divf %9, %10 : vector<64x1xf32>
    %cst_4 = arith.constant 9.99999974E-6 : f32
    %12 = vector.broadcast %cst_4 : f32 to vector<64x1xf32>
    %13 = arith.addf %11, %12 : vector<64x1xf32>
    %14 = math.rsqrt %13 : vector<64x1xf32>
    %c0_5 = arith.constant 0 : index
    %c0_6 = arith.constant 0 : index
    %15 = vector.load %arg2[%c0_5, %c0_6] : memref<1x768xf32, #tpu.memory_space<vmem>>, vector<1x768xf32>
    %c0_7 = arith.constant 0 : index
    %c0_8 = arith.constant 0 : index
    %16 = vector.load %arg3[%c0_7, %c0_8] : memref<1x768xf32, #tpu.memory_space<vmem>>, vector<1x768xf32>
    %17 = vector.broadcast %14 : vector<64x1xf32> to vector<64x768xf32>
    %18 = arith.mulf %6, %17 : vector<64x768xf32>
    %19 = vector.broadcast %15 : vector<1x768xf32> to vector<64x768xf32>
    %20 = arith.mulf %18, %19 : vector<64x768xf32>
    %21 = vector.broadcast %16 : vector<1x768xf32> to vector<64x768xf32>
    %22 = arith.addf %20, %21 : vector<64x768xf32>
    %c0_9 = arith.constant 0 : index
    %c0_10 = arith.constant 0 : index
    %23 = vector.load %arg4[%c0_9, %c0_10] : memref<64x768xf32, #tpu.memory_space<vmem>>, vector<64x768xf32>
    tpu.vector_store %arg4[%c0_9, %c0_10], %22 {strides = array<i32>} : memref<64x768xf32, #tpu.memory_space<vmem>>, vector<64x768xf32>,
    return
  }
  func.func @transform_0(%arg0: i32) -> (i32, i32) {
    %c0_i32 = arith.constant 0 : i32
    %c0_i32_0 = arith.constant 0 : i32
    return %arg0, %c0_i32 : i32, i32
  }
  func.func @transform_1(%arg0: i32) -> (i32, i32) {
    %c0_i32 = arith.constant 0 : i32
    %c0_i32_0 = arith.constant 0 : i32
    %c0_i32_1 = arith.constant 0 : i32
    return %c0_i32, %c0_i32_0 : i32, i32
  }
  func.func @transform_2(%arg0: i32) -> (i32, i32) {
    %c0_i32 = arith.constant 0 : i32
    %c0_i32_0 = arith.constant 0 : i32
    %c0_i32_1 = arith.constant 0 : i32
    return %c0_i32, %c0_i32_0 : i32, i32
  }
  func.func @transform_3(%arg0: i32) -> (i32, i32) {
    %c0_i32 = arith.constant 0 : i32
    %c0_i32_0 = arith.constant 0 : i32
    return %arg0, %c0_i32 : i32, i32
  }
}

</mosaic_0001>

<llo_original>
// kernel: tpu_custom_call.1
$region0: #{tpu_custom_call.1}
  #allocation0 [shape = 'u32[]', space=smem, size = 0x4, offset = 0x4, fixed_abs, tag = 'smem constant byte address 0x4 - core index']
  #allocation1 [shape = 'u32[144,128]{1,0:T(1,128)}', space=vmem, size = 0x12000, scoped, tag = 'internal scratch']
  %s0 = inlined_call_operand.hbm [shape: f32[64,768], index: 0, kind: input, shape index: {}]
  %s1 = inlined_call_operand.hbm [shape: f32[1,768], index: 1, kind: input, shape index: {}]
  %s2 = inlined_call_operand.vmem [shape: f32[1,768], index: 2, kind: input, shape index: {}]
  %s3 = inlined_call_operand.hbm [shape: f32[64,768], index: 3, kind: output, shape index: {}]
  %s4 = sld [smem:[#allocation0]]
  $region30: #{tpu_custom_call.1} parent=0
    _
  %s6 = ssub.s32 1, %s4
  %s7 = scalar_select 0, %s6, %s4
  $region1: #{tpu_custom_call.1} parent=0
    #allocation2 [shape = 'u8[196608]{0}', space=vmem, size = 0x30000, scoped, tag = 'input window, operand 0, single buffered']
    #allocation3 [shape = 's32[1]{0}', space=sflag, size = 0x4, scoped, tag = 'scoped memory for tpu_custom_call.1']
    #allocation4 [shape = 's32[1]{0}', space=sflag, size = 0x4, scoped, tag = 'scoped memory for tpu_custom_call.1']
    #allocation5 [shape = 'u8[3072]{0}', space=vmem, size = 0xc00, scoped, tag = 'input window, operand 1, single buffered']
    #allocation6 [shape = 's32[1]{0}', space=sflag, size = 0x4, scoped, tag = 'scoped memory for tpu_custom_call.1']
    #allocation7 [shape = 'u8[196608]{0}', space=vmem, size = 0x30000, scoped, tag = 'output window, operand 0, single buffered']
    %8 = vsyncpa [#allocation3], 0
    %9 = vsyncpa [#allocation6], 0
    %10 = vsyncpa [#allocation4], 0
    // Predicated region
    $region2: #{tpu_custom_call.1} parent=1 // pred_check
      _
    $region3: #{tpu_custom_call.1} parent=1 // pred_check_branch
      %12 = sbr.rel (0) target = $region5
    $region4: #{tpu_custom_call.1} parent=1 // pred_region
      %s14 = ssub.s32 6144, 6144
      %15 = vsyncadd [#allocation3], %s14
      %s16 = sshll.u32 [#allocation2], 4
      %s17 = int_to_ptr.vmem [resolvable:$true] %s16
      %22 = dma.hbm_to_vmem [thread:$0]  %s0, 6144, %s17, [#allocation3], 768, 768, 48
    $region5: #{tpu_custom_call.1} parent=1 // pred_fallthru
      _
    // Predicated region
    $region6: #{tpu_custom_call.1} parent=1 // pred_check
      _
    $region7: #{tpu_custom_call.1} parent=1 // pred_check_branch
      %24 = sbr.rel (0) target = $region9
    $region8: #{tpu_custom_call.1} parent=1 // pred_region
      %s26 = ssub.s32 96, 96
      %27 = vsyncadd [#allocation6], %s26
      %s29 = sshll.u32 [#allocation5], 4
      %s30 = int_to_ptr.vmem [resolvable:$true] %s29
      %32 = dma.hbm_to_vmem [thread:$0]  %s1, 96, %s30, [#allocation6]
    $region9: #{tpu_custom_call.1} parent=1 // pred_fallthru
      _
    // Predicated region
    $region10: #{tpu_custom_call.1} parent=1 // pred_check
      _
    $region11: #{tpu_custom_call.1} parent=1 // pred_check_branch
      %34 = sbr.rel (0) target = $region13
    $region12: #{tpu_custom_call.1} parent=1 // pred_region
      _
    $region13: #{tpu_custom_call.1} parent=1 // pred_fallthru
      _
    // Predicated region
    $region14: #{tpu_custom_call.1} parent=1 // pred_check
      _
    $region15: #{tpu_custom_call.1} parent=1 // pred_check_branch
      %36 = sbr.rel (0) target = $region17
    $region16: #{tpu_custom_call.1} parent=1 // pred_region
      %37 = dma.done [#allocation3], 6144
    $region17: #{tpu_custom_call.1} parent=1 // pred_fallthru
      _
    // Predicated region
    $region18: #{tpu_custom_call.1} parent=1 // pred_check
      _
    $region19: #{tpu_custom_call.1} parent=1 // pred_check_branch
      %39 = sbr.rel (0) target = $region21
    $region20: #{tpu_custom_call.1} parent=1 // pred_region
      %40 = dma.done [#allocation6], 96
    $region21: #{tpu_custom_call.1} parent=1 // pred_fallthru
      _
    %v41 = vld [vmem:[#allocation2] sm:$0xff]
    %v42 = vld [vmem:[#allocation2 + $0x8] sm:$0xff]
    %v43 = vld [vmem:[#allocation2 + $0x10] sm:$0xff]
    %v44 = vld [vmem:[#allocation2 + $0x18] sm:$0xff]
    %v45 = vld [vmem:[#allocation2 + $0x20] sm:$0xff]
    %v46 = vld [vmem:[#allocation2 + $0x28] sm:$0xff]
    %v47 = vld [vmem:[#allocation2 + $0x30] sm:$0xff]
    %v48 = vld [vmem:[#allocation2 + $0x38] sm:$0xff]
    %v49 = vld [vmem:[#allocation2 + $0x40] sm:$0xff]
    %v50 = vld [vmem:[#allocation2 + $0x48] sm:$0xff]
    %v51 = vld [vmem:[#allocation2 + $0x50] sm:$0xff]
    %v52 = vld [vmem:[#allocation2 + $0x58] sm:$0xff]
    %v53 = vld [vmem:[#allocation2 + $0x60] sm:$0xff]
    %v54 = vld [vmem:[#allocation2 + $0x68] sm:$0xff]
    %v55 = vld [vmem:[#allocation2 + $0x70] sm:$0xff]
    %v56 = vld [vmem:[#allocation2 + $0x78] sm:$0xff]
    %v57 = vld [vmem:[#allocation2 + $0x80] sm:$0xff]
    %v58 = vld [vmem:[#allocation2 + $0x88] sm:$0xff]
    %v59 = vld [vmem:[#allocation2 + $0x90] sm:$0xff]
    %v60 = vld [vmem:[#allocation2 + $0x98] sm:$0xff]
    %v61 = vld [vmem:[#allocation2 + $0xa0] sm:$0xff]
    %v62 = vld [vmem:[#allocation2 + $0xa8] sm:$0xff]
    %v63 = vld [vmem:[#allocation2 + $0xb0] sm:$0xff]
    %v64 = vld [vmem:[#allocation2 + $0xb8] sm:$0xff]
    %v65 = vld [vmem:[#allocation2 + $0xc0] sm:$0xff]
    %v66 = vld [vmem:[#allocation2 + $0xc8] sm:$0xff]
    %v67 = vld [vmem:[#allocation2 + $0xd0] sm:$0xff]
    %v68 = vld [vmem:[#allocation2 + $0xd8] sm:$0xff]
    %v69 = vld [vmem:[#allocation2 + $0xe0] sm:$0xff]
    %v70 = vld [vmem:[#allocation2 + $0xe8] sm:$0xff]
    %v71 = vld [vmem:[#allocation2 + $0xf0] sm:$0xff]
    %v72 = vld [vmem:[#allocation2 + $0xf8] sm:$0xff]
    %v73 = vld [vmem:[#allocation2 + $0x100] sm:$0xff]
    %v74 = vld [vmem:[#allocation2 + $0x108] sm:$0xff]
    %v75 = vld [vmem:[#allocation2 + $0x110] sm:$0xff]
    %v76 = vld [vmem:[#allocation2 + $0x118] sm:$0xff]
    %v77 = vld [vmem:[#allocation2 + $0x120] sm:$0xff]
    %v78 = vld [vmem:[#allocation2 + $0x128] sm:$0xff]
    %v79 = vld [vmem:[#allocation2 + $0x130] sm:$0xff]
    %v80 = vld [vmem:[#allocation2 + $0x138] sm:$0xff]
    %v81 = vld [vmem:[#allocation2 + $0x140] sm:$0xff]
    %v82 = vld [vmem:[#allocation2 + $0x148] sm:$0xff]
    %v83 = vld [vmem:[#allocation2 + $0x150] sm:$0xff]
    %v84 = vld [vmem:[#allocation2 + $0x158] sm:$0xff]
    %v85 = vld [vmem:[#allocation2 + $0x160] sm:$0xff]
    %v86 = vld [vmem:[#allocation2 + $0x168] sm:$0xff]
    %v87 = vld [vmem:[#allocation2 + $0x170] sm:$0xff]
    %v88 = vld [vmem:[#allocation2 + $0x178] sm:$0xff]
    %v89 = vadd.f32 %v41, %v42
    %v90 = vadd.f32 %v89, %v43
    %v91 = vadd.f32 %v90, %v44
    %v92 = vadd.f32 %v91, %v45
    %v93 = vadd.f32 %v92, %v46
    %94 = vadd.xlane.f32.xlu0 %v93
    %v95 = vpop.xlane.xlu0 %94
    %v96 = vadd.f32 %v47, %v48
    %v97 = vadd.f32 %v96, %v49
    %v98 = vadd.f32 %v97, %v50
    %v99 = vadd.f32 %v98, %v51
    %v100 = vadd.f32 %v99, %v52
    %101 = vadd.xlane.f32.xlu0 %v100
    %v102 = vpop.xlane.xlu0 %101
    %v103 = vadd.f32 %v53, %v54
    %v104 = vadd.f32 %v103, %v55
    %v105 = vadd.f32 %v104, %v56
    %v106 = vadd.f32 %v105, %v57
    %v107 = vadd.f32 %v106, %v58
    %108 = vadd.xlane.f32.xlu0 %v107
    %v109 = vpop.xlane.xlu0 %108
    %v110 = vadd.f32 %v59, %v60
    %v111 = vadd.f32 %v110, %v61
    %v112 = vadd.f32 %v111, %v62
    %v113 = vadd.f32 %v112, %v63
    %v114 = vadd.f32 %v113, %v64
    %115 = vadd.xlane.f32.xlu0 %v114
    %v116 = vpop.xlane.xlu0 %115
    %v117 = vadd.f32 %v65, %v66
    %v118 = vadd.f32 %v117, %v67
    %v119 = vadd.f32 %v118, %v68
    %v120 = vadd.f32 %v119, %v69
    %v121 = vadd.f32 %v120, %v70
    %122 = vadd.xlane.f32.xlu0 %v121
    %v123 = vpop.xlane.xlu0 %122
    %v124 = vadd.f32 %v71, %v72
    %v125 = vadd.f32 %v124, %v73
    %v126 = vadd.f32 %v125, %v74
    %v127 = vadd.f32 %v126, %v75
    %v128 = vadd.f32 %v127, %v76
    %129 = vadd.xlane.f32.xlu0 %v128
    %v130 = vpop.xlane.xlu0 %129
    %v131 = vadd.f32 %v77, %v78
    %v132 = vadd.f32 %v131, %v79
    %v133 = vadd.f32 %v132, %v80
    %v134 = vadd.f32 %v133, %v81
    %v135 = vadd.f32 %v134, %v82
    %136 = vadd.xlane.f32.xlu0 %v135
    %v137 = vpop.xlane.xlu0 %136
    %v138 = vadd.f32 %v83, %v84
    %v139 = vadd.f32 %v138, %v85
    %v140 = vadd.f32 %v139, %v86
    %v141 = vadd.f32 %v140, %v87
    %v142 = vadd.f32 %v141, %v88
    %143 = vadd.xlane.f32.xlu0 %v142
    %v144 = vpop.xlane.xlu0 %143
    %v145 = vrcp.pop 768.0
    %v146 = vmul.f32 %v95, %v145
    %v147 = vmul.f32 %v102, %v145
    %v148 = vmul.f32 %v109, %v145
    %v149 = vmul.f32 %v116, %v145
    %v150 = vmul.f32 %v123, %v145
    %v151 = vmul.f32 %v130, %v145
    %v152 = vmul.f32 %v137, %v145
    %v153 = vmul.f32 %v144, %v145
    %v154 = vsub.f32 %v41, %v146
    %v155 = vsub.f32 %v42, %v146
    %v156 = vsub.f32 %v43, %v146
    %v157 = vsub.f32 %v44, %v146
    %v158 = vsub.f32 %v45, %v146
    %v159 = vsub.f32 %v46, %v146
    %v160 = vsub.f32 %v47, %v147
    %v161 = vsub.f32 %v48, %v147
    %v162 = vsub.f32 %v49, %v147
    %v163 = vsub.f32 %v50, %v147
    %v164 = vsub.f32 %v51, %v147
    %v165 = vsub.f32 %v52, %v147
    %v166 = vsub.f32 %v53, %v148
    %v167 = vsub.f32 %v54, %v148
    %v168 = vsub.f32 %v55, %v148
    %v169 = vsub.f32 %v56, %v148
    %v170 = vsub.f32 %v57, %v148
    %v171 = vsub.f32 %v58, %v148
    %v172 = vsub.f32 %v59, %v149
    %v173 = vsub.f32 %v60, %v149
    %v174 = vsub.f32 %v61, %v149
    %v175 = vsub.f32 %v62, %v149
    %v176 = vsub.f32 %v63, %v149
    %v177 = vsub.f32 %v64, %v149
    %v178 = vsub.f32 %v65, %v150
    %v179 = vsub.f32 %v66, %v150
    %v180 = vsub.f32 %v67, %v150
    %v181 = vsub.f32 %v68, %v150
    %v182 = vsub.f32 %v69, %v150
    %v183 = vsub.f32 %v70, %v150
    %v184 = vsub.f32 %v71, %v151
    %v185 = vsub.f32 %v72, %v151
    %v186 = vsub.f32 %v73, %v151
    %v187 = vsub.f32 %v74, %v151
    %v188 = vsub.f32 %v75, %v151
    %v189 = vsub.f32 %v76, %v151
    %v190 = vsub.f32 %v77, %v152
    %v191 = vsub.f32 %v78, %v152
    %v192 = vsub.f32 %v79, %v152
    %v193 = vsub.f32 %v80, %v152
    %v194 = vsub.f32 %v81, %v152
    %v195 = vsub.f32 %v82, %v152
    %v196 = vsub.f32 %v83, %v153
    %v197 = vsub.f32 %v84, %v153
    %v198 = vsub.f32 %v85, %v153
    %v199 = vsub.f32 %v86, %v153
    %v200 = vsub.f32 %v87, %v153
    %v201 = vsub.f32 %v88, %v153
    %v202 = vmul.f32 %v154, %v154
    %v203 = vmul.f32 %v155, %v155
    %v204 = vmul.f32 %v156, %v156
    %v205 = vmul.f32 %v157, %v157
    %v206 = vmul.f32 %v158, %v158
    %v207 = vmul.f32 %v159, %v159
    %v208 = vmul.f32 %v160, %v160
    %v209 = vmul.f32 %v161, %v161
    %v210 = vmul.f32 %v162, %v162
    %v211 = vmul.f32 %v163, %v163
    %v212 = vmul.f32 %v164, %v164
    %v213 = vmul.f32 %v165, %v165
    %v214 = vmul.f32 %v166, %v166
    %v215 = vmul.f32 %v167, %v167
    %v216 = vmul.f32 %v168, %v168
    %v217 = vmul.f32 %v169, %v169
    %v218 = vmul.f32 %v170, %v170
    %v219 = vmul.f32 %v171, %v171
    %v220 = vmul.f32 %v172, %v172
    %v221 = vmul.f32 %v173, %v173
    %v222 = vmul.f32 %v174, %v174
    %v223 = vmul.f32 %v175, %v175
    %v224 = vmul.f32 %v176, %v176
    %v225 = vmul.f32 %v177, %v177
    %v226 = vmul.f32 %v178, %v178
    %v227 = vmul.f32 %v179, %v179
    %v228 = vmul.f32 %v180, %v180
    %v229 = vmul.f32 %v181, %v181
    %v230 = vmul.f32 %v182, %v182
    %v231 = vmul.f32 %v183, %v183
    %v232 = vmul.f32 %v184, %v184
    %v233 = vmul.f32 %v185, %v185
    %v234 = vmul.f32 %v186, %v186
    %v235 = vmul.f32 %v187, %v187
    %v236 = vmul.f32 %v188, %v188
    %v237 = vmul.f32 %v189, %v189
    %v238 = vmul.f32 %v190, %v190
    %v239 = vmul.f32 %v191, %v191
    %v240 = vmul.f32 %v192, %v192
    %v241 = vmul.f32 %v193, %v193
    %v242 = vmul.f32 %v194, %v194
    %v243 = vmul.f32 %v195, %v195
    %v244 = vmul.f32 %v196, %v196
    %v245 = vmul.f32 %v197, %v197
    %v246 = vmul.f32 %v198, %v198
    %v247 = vmul.f32 %v199, %v199
    %v248 = vmul.f32 %v200, %v200
    %v249 = vmul.f32 %v201, %v201
    %v250 = vadd.f32 %v202, %v203
    %v251 = vadd.f32 %v250, %v204
    %v252 = vadd.f32 %v251, %v205
    %v253 = vadd.f32 %v252, %v206
    %v254 = vadd.f32 %v253, %v207
    %255 = vadd.xlane.f32.xlu0 %v254
    %v256 = vpop.xlane.xlu0 %255
    %v257 = vadd.f32 %v208, %v209
    %v258 = vadd.f32 %v257, %v210
    %v259 = vadd.f32 %v258, %v211
    %v260 = vadd.f32 %v259, %v212
    %v261 = vadd.f32 %v260, %v213
    %262 = vadd.xlane.f32.xlu0 %v261
    %v263 = vpop.xlane.xlu0 %262
    %v264 = vadd.f32 %v214, %v215
    %v265 = vadd.f32 %v264, %v216
    %v266 = vadd.f32 %v265, %v217
    %v267 = vadd.f32 %v266, %v218
    %v268 = vadd.f32 %v267, %v219
    %269 = vadd.xlane.f32.xlu0 %v268
    %v270 = vpop.xlane.xlu0 %269
    %v271 = vadd.f32 %v220, %v221
    %v272 = vadd.f32 %v271, %v222
    %v273 = vadd.f32 %v272, %v223
    %v274 = vadd.f32 %v273, %v224
    %v275 = vadd.f32 %v274, %v225
    %276 = vadd.xlane.f32.xlu0 %v275
    %v277 = vpop.xlane.xlu0 %276
    %v278 = vadd.f32 %v226, %v227
    %v279 = vadd.f32 %v278, %v228
    %v280 = vadd.f32 %v279, %v229
    %v281 = vadd.f32 %v280, %v230
    %v282 = vadd.f32 %v281, %v231
    %283 = vadd.xlane.f32.xlu0 %v282
    %v284 = vpop.xlane.xlu0 %283
    %v285 = vadd.f32 %v232, %v233
    %v286 = vadd.f32 %v285, %v234
    %v287 = vadd.f32 %v286, %v235
    %v288 = vadd.f32 %v287, %v236
    %v289 = vadd.f32 %v288, %v237
    %290 = vadd.xlane.f32.xlu0 %v289
    %v291 = vpop.xlane.xlu0 %290
    %v292 = vadd.f32 %v238, %v239
    %v293 = vadd.f32 %v292, %v240
    %v294 = vadd.f32 %v293, %v241
    %v295 = vadd.f32 %v294, %v242
    %v296 = vadd.f32 %v295, %v243
    %297 = vadd.xlane.f32.xlu0 %v296
    %v298 = vpop.xlane.xlu0 %297
    %v299 = vadd.f32 %v244, %v245
    %v300 = vadd.f32 %v299, %v246
    %v301 = vadd.f32 %v300, %v247
    %v302 = vadd.f32 %v301, %v248
    %v303 = vadd.f32 %v302, %v249
    %304 = vadd.xlane.f32.xlu0 %v303
    %v305 = vpop.xlane.xlu0 %304
    %v306 = vmul.f32 %v256, %v145
    %v307 = vmul.f32 %v263, %v145
    %v308 = vmul.f32 %v270, %v145
    %v309 = vmul.f32 %v277, %v145
    %v310 = vmul.f32 %v284, %v145
    %v311 = vmul.f32 %v291, %v145
    %v312 = vmul.f32 %v298, %v145
    %v313 = vmul.f32 %v305, %v145
    %v314 = vadd.f32 %v306, 1e-05
    %v315 = vadd.f32 %v307, 1e-05
    %v316 = vadd.f32 %v308, 1e-05
    %v317 = vadd.f32 %v309, 1e-05
    %v318 = vadd.f32 %v310, 1e-05
    %v319 = vadd.f32 %v311, 1e-05
    %v320 = vadd.f32 %v312, 1e-05
    %v321 = vadd.f32 %v313, 1e-05
    %v322 = vrsqrt.pop %v314
    %v323 = vrsqrt.pop %v315
    %v324 = vrsqrt.pop %v316
    %v325 = vrsqrt.pop %v317
    %v326 = vrsqrt.pop %v318
    %v327 = vrsqrt.pop %v319
    %v328 = vrsqrt.pop %v320
    %v329 = vrsqrt.pop %v321
    %v330 = vld [vmem:[#allocation5] sm:$0x3f]
    %v331 = vld [vmem:[%s2] sm:$0x3f]
    %v332 = vmul.f32 %v154, %v322
    %v333 = vmul.f32 %v155, %v322
    %v334 = vmul.f32 %v156, %v322
    %v335 = vmul.f32 %v157, %v322
    %v336 = vmul.f32 %v158, %v322
    %v337 = vmul.f32 %v159, %v322
    %v338 = vmul.f32 %v160, %v323
    %v339 = vmul.f32 %v161, %v323
    %v340 = vmul.f32 %v162, %v323
    %v341 = vmul.f32 %v163, %v323
    %v342 = vmul.f32 %v164, %v323
    %v343 = vmul.f32 %v165, %v323
    %v344 = vmul.f32 %v166, %v324
    %v345 = vmul.f32 %v167, %v324
    %v346 = vmul.f32 %v168, %v324
    %v347 = vmul.f32 %v169, %v324
    %v348 = vmul.f32 %v170, %v324
    %v349 = vmul.f32 %v171, %v324
    %v350 = vmul.f32 %v172, %v325
    %v351 = vmul.f32 %v173, %v325
    %v352 = vmul.f32 %v174, %v325
    %v353 = vmul.f32 %v175, %v325
    %v354 = vmul.f32 %v176, %v325
    %v355 = vmul.f32 %v177, %v325
    %v356 = vmul.f32 %v178, %v326
    %v357 = vmul.f32 %v179, %v326
    %v358 = vmul.f32 %v180, %v326
    %v359 = vmul.f32 %v181, %v326
    %v360 = vmul.f32 %v182, %v326
    %v361 = vmul.f32 %v183, %v326
    %v362 = vmul.f32 %v184, %v327
    %v363 = vmul.f32 %v185, %v327
    %v364 = vmul.f32 %v186, %v327
    %v365 = vmul.f32 %v187, %v327
    %v366 = vmul.f32 %v188, %v327
    %v367 = vmul.f32 %v189, %v327
    %v368 = vmul.f32 %v190, %v328
    %v369 = vmul.f32 %v191, %v328
    %v370 = vmul.f32 %v192, %v328
    %v371 = vmul.f32 %v193, %v328
    %v372 = vmul.f32 %v194, %v328
    %v373 = vmul.f32 %v195, %v328
    %v374 = vmul.f32 %v196, %v329
    %v375 = vmul.f32 %v197, %v329
    %v376 = vmul.f32 %v198, %v329
    %v377 = vmul.f32 %v199, %v329
    %v378 = vmul.f32 %v200, %v329
    %v379 = vmul.f32 %v201, %v329
    %v381 = vlaneseq
    %v382 = vshrl.u32 %v381, 7
    %v383 = vsub.s32 0, %v382
    %v384 = vrot.slane %v330, %v383
    %v385 = vlaneseq
    %v386 = vshrl.u32 %v385, 7
    %v387 = vsub.s32 1, %v386
    %v388 = vrot.slane %v330, %v387
    %v389 = vlaneseq
    %v390 = vshrl.u32 %v389, 7
    %v391 = vsub.s32 2, %v390
    %v392 = vrot.slane %v330, %v391
    %v393 = vlaneseq
    %v394 = vshrl.u32 %v393, 7
    %v395 = vsub.s32 3, %v394
    %v396 = vrot.slane %v330, %v395
    %v397 = vlaneseq
    %v398 = vshrl.u32 %v397, 7
    %v399 = vsub.s32 4, %v398
    %v400 = vrot.slane %v330, %v399
    %v401 = vlaneseq
    %v402 = vshrl.u32 %v401, 7
    %v403 = vsub.s32 5, %v402
    %v404 = vrot.slane %v330, %v403
    %v411 = vmul.f32 %v332, %v384
    %v412 = vmul.f32 %v333, %v388
    %v413 = vmul.f32 %v334, %v392
    %v414 = vmul.f32 %v335, %v396
    %v415 = vmul.f32 %v336, %v400
    %v416 = vmul.f32 %v337, %v404
    %v417 = vmul.f32 %v338, %v384
    %v418 = vmul.f32 %v339, %v388
    %v419 = vmul.f32 %v340, %v392
    %v420 = vmul.f32 %v341, %v396
    %v421 = vmul.f32 %v342, %v400
    %v422 = vmul.f32 %v343, %v404
    %v423 = vmul.f32 %v344, %v384
    %v424 = vmul.f32 %v345, %v388
    %v425 = vmul.f32 %v346, %v392
    %v426 = vmul.f32 %v347, %v396
    %v427 = vmul.f32 %v348, %v400
    %v428 = vmul.f32 %v349, %v404
    %v429 = vmul.f32 %v350, %v384
    %v430 = vmul.f32 %v351, %v388
    %v431 = vmul.f32 %v352, %v392
    %v432 = vmul.f32 %v353, %v396
    %v433 = vmul.f32 %v354, %v400
    %v434 = vmul.f32 %v355, %v404
    %v435 = vmul.f32 %v356, %v384
    %v436 = vmul.f32 %v357, %v388
    %v437 = vmul.f32 %v358, %v392
    %v438 = vmul.f32 %v359, %v396
    %v439 = vmul.f32 %v360, %v400
    %v440 = vmul.f32 %v361, %v404
    %v441 = vmul.f32 %v362, %v384
    %v442 = vmul.f32 %v363, %v388
    %v443 = vmul.f32 %v364, %v392
    %v444 = vmul.f32 %v365, %v396
    %v445 = vmul.f32 %v366, %v400
    %v446 = vmul.f32 %v367, %v404
    %v447 = vmul.f32 %v368, %v384
    %v448 = vmul.f32 %v369, %v388
    %v449 = vmul.f32 %v370, %v392
    %v450 = vmul.f32 %v371, %v396
    %v451 = vmul.f32 %v372, %v400
    %v452 = vmul.f32 %v373, %v404
    %v453 = vmul.f32 %v374, %v384
    %v454 = vmul.f32 %v375, %v388
    %v455 = vmul.f32 %v376, %v392
    %v456 = vmul.f32 %v377, %v396
    %v457 = vmul.f32 %v378, %v400
    %v458 = vmul.f32 %v379, %v404
    %v460 = vlaneseq
    %v461 = vshrl.u32 %v460, 7
    %v462 = vsub.s32 0, %v461
    %v463 = vrot.slane %v331, %v462
    %v464 = vlaneseq
    %v465 = vshrl.u32 %v464, 7
    %v466 = vsub.s32 1, %v465
    %v467 = vrot.slane %v331, %v466
    %v468 = vlaneseq
    %v469 = vshrl.u32 %v468, 7
    %v470 = vsub.s32 2, %v469
    %v471 = vrot.slane %v331, %v470
    %v472 = vlaneseq
    %v473 = vshrl.u32 %v472, 7
    %v474 = vsub.s32 3, %v473
    %v475 = vrot.slane %v331, %v474
    %v476 = vlaneseq
    %v477 = vshrl.u32 %v476, 7
    %v478 = vsub.s32 4, %v477
    %v479 = vrot.slane %v331, %v478
    %v480 = vlaneseq
    %v481 = vshrl.u32 %v480, 7
    %v482 = vsub.s32 5, %v481
    %v483 = vrot.slane %v331, %v482
    %v490 = vadd.f32 %v411, %v463
    %v491 = vadd.f32 %v412, %v467
    %v492 = vadd.f32 %v413, %v471
    %v493 = vadd.f32 %v414, %v475
    %v494 = vadd.f32 %v415, %v479
    %v495 = vadd.f32 %v416, %v483
    %v496 = vadd.f32 %v417, %v463
    %v497 = vadd.f32 %v418, %v467
    %v498 = vadd.f32 %v419, %v471
    %v499 = vadd.f32 %v420, %v475
    %v500 = vadd.f32 %v421, %v479
    %v501 = vadd.f32 %v422, %v483
    %v502 = vadd.f32 %v423, %v463
    %v503 = vadd.f32 %v424, %v467
    %v504 = vadd.f32 %v425, %v471
    %v505 = vadd.f32 %v426, %v475
    %v506 = vadd.f32 %v427, %v479
    %v507 = vadd.f32 %v428, %v483
    %v508 = vadd.f32 %v429, %v463
    %v509 = vadd.f32 %v430, %v467
    %v510 = vadd.f32 %v431, %v471
    %v511 = vadd.f32 %v432, %v475
    %v512 = vadd.f32 %v433, %v479
    %v513 = vadd.f32 %v434, %v483
    %v514 = vadd.f32 %v435, %v463
    %v515 = vadd.f32 %v436, %v467
    %v516 = vadd.f32 %v437, %v471
    %v517 = vadd.f32 %v438, %v475
    %v518 = vadd.f32 %v439, %v479
    %v519 = vadd.f32 %v440, %v483
    %v520 = vadd.f32 %v441, %v463
    %v521 = vadd.f32 %v442, %v467
    %v522 = vadd.f32 %v443, %v471
    %v523 = vadd.f32 %v444, %v475
    %v524 = vadd.f32 %v445, %v479
    %v525 = vadd.f32 %v446, %v483
    %v526 = vadd.f32 %v447, %v463
    %v527 = vadd.f32 %v448, %v467
    %v528 = vadd.f32 %v449, %v471
    %v529 = vadd.f32 %v450, %v475
    %v530 = vadd.f32 %v451, %v479
    %v531 = vadd.f32 %v452, %v483
    %v532 = vadd.f32 %v453, %v463
    %v533 = vadd.f32 %v454, %v467
    %v534 = vadd.f32 %v455, %v471
    %v535 = vadd.f32 %v456, %v475
    %v536 = vadd.f32 %v457, %v479
    %v537 = vadd.f32 %v458, %v483
    %538 = vst [vmem:[#allocation7] sm:$0xff] %v490
    %539 = vst [vmem:[#allocation7 + $0x8] sm:$0xff] %v491
    %540 = vst [vmem:[#allocation7 + $0x10] sm:$0xff] %v492
    %541 = vst [vmem:[#allocation7 + $0x18] sm:$0xff] %v493
    %542 = vst [vmem:[#allocation7 + $0x20] sm:$0xff] %v494
    %543 = vst [vmem:[#allocation7 + $0x28] sm:$0xff] %v495
    %544 = vst [vmem:[#allocation7 + $0x30] sm:$0xff] %v496
    %545 = vst [vmem:[#allocation7 + $0x38] sm:$0xff] %v497
    %546 = vst [vmem:[#allocation7 + $0x40] sm:$0xff] %v498
    %547 = vst [vmem:[#allocation7 + $0x48] sm:$0xff] %v499
    %548 = vst [vmem:[#allocation7 + $0x50] sm:$0xff] %v500
    %549 = vst [vmem:[#allocation7 + $0x58] sm:$0xff] %v501
    %550 = vst [vmem:[#allocation7 + $0x60] sm:$0xff] %v502
    %551 = vst [vmem:[#allocation7 + $0x68] sm:$0xff] %v503
    %552 = vst [vmem:[#allocation7 + $0x70] sm:$0xff] %v504
    %553 = vst [vmem:[#allocation7 + $0x78] sm:$0xff] %v505
    %554 = vst [vmem:[#allocation7 + $0x80] sm:$0xff] %v506
    %555 = vst [vmem:[#allocation7 + $0x88] sm:$0xff] %v507
    %556 = vst [vmem:[#allocation7 + $0x90] sm:$0xff] %v508
    %557 = vst [vmem:[#allocation7 + $0x98] sm:$0xff] %v509
    %558 = vst [vmem:[#allocation7 + $0xa0] sm:$0xff] %v510
    %559 = vst [vmem:[#allocation7 + $0xa8] sm:$0xff] %v511
    %560 = vst [vmem:[#allocation7 + $0xb0] sm:$0xff] %v512
    %561 = vst [vmem:[#allocation7 + $0xb8] sm:$0xff] %v513
    %562 = vst [vmem:[#allocation7 + $0xc0] sm:$0xff] %v514
    %563 = vst [vmem:[#allocation7 + $0xc8] sm:$0xff] %v515
    %564 = vst [vmem:[#allocation7 + $0xd0] sm:$0xff] %v516
    %565 = vst [vmem:[#allocation7 + $0xd8] sm:$0xff] %v517
    %566 = vst [vmem:[#allocation7 + $0xe0] sm:$0xff] %v518
    %567 = vst [vmem:[#allocation7 + $0xe8] sm:$0xff] %v519
    %568 = vst [vmem:[#allocation7 + $0xf0] sm:$0xff] %v520
    %569 = vst [vmem:[#allocation7 + $0xf8] sm:$0xff] %v521
    %570 = vst [vmem:[#allocation7 + $0x100] sm:$0xff] %v522
    %571 = vst [vmem:[#allocation7 + $0x108] sm:$0xff] %v523
    %572 = vst [vmem:[#allocation7 + $0x110] sm:$0xff] %v524
    %573 = vst [vmem:[#allocation7 + $0x118] sm:$0xff] %v525
    %574 = vst [vmem:[#allocation7 + $0x120] sm:$0xff] %v526
    %575 = vst [vmem:[#allocation7 + $0x128] sm:$0xff] %v527
    %576 = vst [vmem:[#allocation7 + $0x130] sm:$0xff] %v528
    %577 = vst [vmem:[#allocation7 + $0x138] sm:$0xff] %v529
    %578 = vst [vmem:[#allocation7 + $0x140] sm:$0xff] %v530
    %579 = vst [vmem:[#allocation7 + $0x148] sm:$0xff] %v531
    %580 = vst [vmem:[#allocation7 + $0x150] sm:$0xff] %v532
    %581 = vst [vmem:[#allocation7 + $0x158] sm:$0xff] %v533
    %582 = vst [vmem:[#allocation7 + $0x160] sm:$0xff] %v534
    %583 = vst [vmem:[#allocation7 + $0x168] sm:$0xff] %v535
    %584 = vst [vmem:[#allocation7 + $0x170] sm:$0xff] %v536
    %585 = vst [vmem:[#allocation7 + $0x178] sm:$0xff] %v537
    // Predicated region
    $region22: #{tpu_custom_call.1} parent=1 // pred_check
      _
    $region23: #{tpu_custom_call.1} parent=1 // pred_check_branch
      %587 = sbr.rel (0) target = $region25
    $region24: #{tpu_custom_call.1} parent=1 // pred_region
      %s589 = ssub.s32 6144, 6144
      %590 = vsyncadd [#allocation4], %s589
      %s591 = sshll.u32 [#allocation7], 4
      %s592 = int_to_ptr.vmem [resolvable:$true] %s591
      %597 = dma.vmem_to_hbm [thread:$0]  %s592, 6144, %s3, [#allocation4], 768, 768, 48
    $region25: #{tpu_custom_call.1} parent=1 // pred_fallthru
      _
    // Predicated region
    $region26: #{tpu_custom_call.1} parent=1 // pred_check
      _
    $region27: #{tpu_custom_call.1} parent=1 // pred_check_branch
      %599 = sbr.rel (0) target = $region29
    $region28: #{tpu_custom_call.1} parent=1 // pred_region
      %600 = dma.done [#allocation4], 6144
    $region29: #{tpu_custom_call.1} parent=1 // pred_fallthru
      _
    %601 = vsyncpa [#allocation3], 1
    %602 = vsyncpa [#allocation6], 1
    %603 = vsyncpa [#allocation4], 1

</llo_original>
